<compile_context>
chip_gen: v5e
topology: v5e:2x2
jax: 0.10.0
libtpu: 0.0.40
codegen_flags: <defaults>
</compile_context>

<pallas_src>
import math

import jax
import jax.numpy as jnp
from jax.experimental import pallas as pl
from jax.experimental.pallas import tpu as pltpu


def _round_up(n, m):
    return -(-n // m) * m


def _vmem_budget_bytes():
    # Size batch tiles from the actual chip's VMEM (64 MiB on v7x, 128 MiB on v5e/v6e)
    # and stay well under the ~32 MiB scoped default: use at most a quarter of physical,
    # capped at 16 MiB, for the pipelined x/out tiles.
    try:
        cap = pltpu.get_tpu_info().vmem_capacity_bytes
    except Exception:  # off-device tracing / older runtimes
        cap = 64 << 20  # assume the smallest (v7x) budget
    return min(cap // 4, 16 << 20)


def _pick_batch_tile(batch, in_size, out_size, operand_itemsize):
    """Largest lane-dense (multiple-of-128) batch tile that fits the VMEM budget and,
    when batch >= 256, leaves >= 2 grid steps so both v7x TensorCores get work."""
    if batch % 128 != 0 or batch <= 128:
        return batch  # full-batch single block keeps the output lane tile legal

    # Per-batch-column VMEM bytes: double-buffered x tile + double-buffered out tile.
    per_col = (2 * _round_up(in_size, 8) * operand_itemsize
               + 2 * _round_up(out_size, 8) * 4)
    max_by_vmem = max(_vmem_budget_bytes() // max(per_col, 1), 128)

    tb = min(batch // 2, max_by_vmem)          # >= 2 blocks for the parallel grid axis
    tb = (tb // 128) * 128
    while tb > 128 and batch % tb != 0:        # keep tiles even / evenly dividing
        tb -= 128
    return max(tb, 128)


def basic_perceptron_forward(x, params, block_cols=None, compute_dtype=jnp.float32):
    """x: [B, input_size] f32 -> flattened output [output_size * B] (== torch's output.view(-1))."""
    w1, b1, w2, b2 = params            # w1: [H, K], b1: [H, 1], w2: [O, H], b2: [O, 1]
    hidden, in_size = w1.shape
    out_size = w2.shape[0]
    batch = x.shape[0]

    operand_itemsize = jnp.dtype(compute_dtype).itemsize
    if block_cols is None:
        block_cols = _pick_batch_tile(batch, in_size, out_size, operand_itemsize)
    block_cols = min(block_cols, batch)
    if block_cols != batch and (block_cols % 128 != 0 or batch % block_cols != 0):
        block_cols = batch             # keep output lane tiles legal (multiple of 128 or full)

    # Lane-dense x layout: [K, B] so batch rides the 128-wide lane axis of every tile.
    xt = x.T.astype(compute_dtype)                      # [K, B]
    w1c = w1.astype(compute_dtype)
    w2c = w2.astype(compute_dtype)

    # Pack both bias vectors into a single f32 [H8 + O8, 1] array; slots are 8-sublane aligned.
    h8 = _round_up(hidden, 8)
    o8 = _round_up(out_size, 8)
    b_all = jnp.zeros((h8 + o8, 1), jnp.float32)
    b_all = b_all.at[:hidden, :].set(b1.astype(jnp.float32))
    b_all = b_all.at[h8:h8 + out_size, :].set(b2.astype(jnp.float32))

    def kernel(xt_ref, w1_ref, w2_ref, b_ref, out_ref):
        # hidden^T = W1 @ x^T : [H,K] @ [K,TB] -> [H,TB]  (MXU, natural orientation, f32 acc)
        ht = jnp.dot(w1_ref[...], xt_ref[...], preferred_element_type=jnp.float32)
        ht = ht + b_ref[0:hidden, :]                    # [H,1] f32 broadcast over batch lanes
        # exact sigmoid in f32 (EUP exp + exact divide; kernel is overhead-bound, not EUP-bound)
        ht = 1.0 / (1.0 + jnp.exp(-ht))
        # output^T = W2 @ hidden^T : [O,H] @ [H,TB] -> [O,TB]  (MXU), lane-dense store
        ot = jnp.dot(w2_ref[...], ht.astype(w2_ref.dtype),
                     preferred_element_type=jnp.float32)
        out_ref[...] = ot + b_ref[h8:h8 + out_size, :]

    n_blocks = pl.cdiv(batch, block_cols)

    out2d = pl.pallas_call(
        kernel,
        out_shape=jax.ShapeDtypeStruct((out_size, batch), jnp.float32),
        grid_spec=pltpu.PrefetchScalarGridSpec(
            num_scalar_prefetch=0,
            grid=(n_blocks,),
            in_specs=[
                pl.BlockSpec((in_size, block_cols), lambda i: (0, i)),   # x^T batch tile (lane-dense)
                pl.BlockSpec((hidden, in_size), lambda i: (0, 0)),       # W1 (VMEM-resident)
                pl.BlockSpec((out_size, hidden), lambda i: (0, 0)),      # W2 (VMEM-resident)
                pl.BlockSpec((h8 + o8, 1), lambda i: (0, 0)),            # packed f32 biases
            ],
            out_specs=pl.BlockSpec((out_size, block_cols), lambda i: (0, i)),
        ),
        compiler_params=pltpu.CompilerParams(
            # batch tiles are independent -> shard the grid across both TCs on v7x
            dimension_semantics=("parallel",),
        ),
    )(xt, w1c, w2c, b_all)

    # torch: (W2 @ h + b2).view(-1) on the feature-major [O, B] tensor -> identical flatten here.
    return out2d.reshape(-1)


def init_params(key, input_size, hidden_size, output_size):
    k1, k2, k3 = jax.random.split(key, 3)
    w1 = jax.random.normal(k1, (hidden_size, input_size), jnp.float32) * math.sqrt(
        2.0 / (input_size + hidden_size))
    b1 = jax.random.normal(k2, (hidden_size, 1), jnp.float32)
    w2 = jax.random.normal(k3, (output_size, hidden_size), jnp.float32) * math.sqrt(
        2.0 / (output_size + hidden_size))
    b2 = jnp.zeros((output_size, 1), jnp.float32)
    return (w1, b1, w2, b2)


def reference_forward(x, params):
    w1, b1, w2, b2 = params
    h = jax.nn.sigmoid(w1 @ x.T + b1)
    o = w2 @ h + b2
    return o.reshape(-1)


if __name__ == "__main__":
    INPUT_SIZE, HIDDEN_SIZE, OUTPUT_SIZE = 32, 32, 4
    BATCH = 256

    key = jax.random.PRNGKey(0)
    kx, kp = jax.random.split(key)
    x = jax.random.normal(kx, (BATCH, INPUT_SIZE), jnp.float32)
    params = init_params(kp, INPUT_SIZE, HIDDEN_SIZE, OUTPUT_SIZE)

    ref = reference_forward(x, params)

    # f32 path: B=256 -> two 128-column batch tiles (exercises the parallel pipelined grid).
    out = jax.block_until_ready(basic_perceptron_forward(x, params))
    assert out.shape == (OUTPUT_SIZE * BATCH,), out.shape
    # exact sigmoid; residual delta is only matmul pass-precision (default TPU dot precision)
    max_diff = jnp.max(jnp.abs(out - ref))
    assert jnp.allclose(out, ref, atol=2e-3, rtol=2e-3), f"f32 mismatch vs reference: {max_diff:.3e}"

    # bf16 operand path: MXU-native operands, f32 accumulation / bias / sigmoid.
    out_bf16 = jax.block_until_ready(
        basic_perceptron_forward(x, params, compute_dtype=jnp.bfloat16))
    max_diff_bf16 = jnp.max(jnp.abs(out_bf16 - ref))
    assert jnp.allclose(out_bf16, ref, atol=5e-2, rtol=5e-2), (
        f"bf16 mismatch vs reference: {max_diff_bf16:.3e}")

    print("KERNEL_OK")
</pallas_src>

<mosaic_0001>
module attributes {stable_mosaic.version = 11 : i64} {
  func.func @kernel(%arg0: i32, %arg1: memref<32x128xf32, #tpu.memory_space<vmem>>, %arg2: memref<32x32xf32, #tpu.memory_space<vmem>>, %arg3: memref<4x32xf32, #tpu.memory_space<vmem>>, %arg4: memref<40x1xf32, #tpu.memory_space<vmem>>, %arg5: memref<4x128xf32, #tpu.memory_space<vmem>>) attributes {dimension_semantics = [#tpu.dimension_semantics<parallel>], iteration_bounds = array<i64: 2>, scalar_prefetch = 0 : i64, scratch_operands = 0 : i64, tpu.core_type = #tpu.core_type<tc>, window_params = [{transform_indices = @transform_0, window_bounds = array<i64: 32, 128>}, {pipeline_mode = #tpu.pipeline_mode<synchronous>, transform_indices = @transform_1, window_bounds = array<i64: 32, 32>}, {pipeline_mode = #tpu.pipeline_mode<synchronous>, transform_indices = @transform_2, window_bounds = array<i64: 4, 32>}, {pipeline_mode = #tpu.pipeline_mode<synchronous>, transform_indices = @transform_3, window_bounds = array<i64: 40, 1>}, {transform_indices = @transform_4, window_bounds = array<i64: 4, 128>}]} {
    %c0 = arith.constant 0 : index
    %c0_0 = arith.constant 0 : index
    %0 = vector.load %arg2[%c0, %c0_0] : memref<32x32xf32, #tpu.memory_space<vmem>>, vector<32x32xf32>
    %c0_1 = arith.constant 0 : index
    %c0_2 = arith.constant 0 : index
    %1 = vector.load %arg1[%c0_1, %c0_2] : memref<32x128xf32, #tpu.memory_space<vmem>>, vector<32x128xf32>
    %cst = arith.constant dense<0.000000e+00> : vector<32x128xf32>
    %2 = tpu.matmul %0, %1, %cst {dimension_numbers = #tpu.dot_dimension_numbers<[1], [0], [0], [1], [0, 0, 1, 1], [], []>} : vector<32x32xf32>, vector<32x128xf32>, vector<32x128xf32> -> vector<32x128xf32>
    %c0_3 = arith.constant 0 : index
    %c0_4 = arith.constant 0 : index
    %3 = vector.load %arg4[%c0_3, %c0_4] : memref<40x1xf32, #tpu.memory_space<vmem>>, vector<32x1xf32>
    %4 = vector.broadcast %3 : vector<32x1xf32> to vector<32x128xf32>
    %5 = arith.addf %2, %4 : vector<32x128xf32>
    %cst_5 = arith.constant 0.000000e+00 : f32
    %6 = vector.broadcast %cst_5 : f32 to vector<32x128xf32>
    %7 = arith.subf %6, %5 : vector<32x128xf32>
    %8 = math.exp %7 : vector<32x128xf32>
    %cst_6 = arith.constant 1.000000e+00 : f32
    %9 = vector.broadcast %cst_6 : f32 to vector<32x128xf32>
    %10 = arith.addf %9, %8 : vector<32x128xf32>
    %cst_7 = arith.constant 1.000000e+00 : f32
    %11 = vector.broadcast %cst_7 : f32 to vector<32x128xf32>
    %12 = arith.divf %11, %10 : vector<32x128xf32>
    %c0_8 = arith.constant 0 : index
    %c0_9 = arith.constant 0 : index
    %13 = vector.load %arg3[%c0_8, %c0_9] : memref<4x32xf32, #tpu.memory_space<vmem>>, vector<4x32xf32>
    %cst_10 = arith.constant dense<0.000000e+00> : vector<4x128xf32>
    %14 = tpu.matmul %13, %12, %cst_10 {dimension_numbers = #tpu.dot_dimension_numbers<[1], [0], [0], [1], [0, 0, 1, 1], [], []>} : vector<4x32xf32>, vector<32x128xf32>, vector<4x128xf32> -> vector<4x128xf32>
    %c32 = arith.constant 32 : index
    %c0_11 = arith.constant 0 : index
    %15 = vector.load %arg4[%c32, %c0_11] : memref<40x1xf32, #tpu.memory_space<vmem>>, vector<4x1xf32>
    %16 = vector.broadcast %15 : vector<4x1xf32> to vector<4x128xf32>
    %17 = arith.addf %14, %16 : vector<4x128xf32>
    %c0_12 = arith.constant 0 : index
    %c0_13 = arith.constant 0 : index
    %18 = vector.load %arg5[%c0_12, %c0_13] : memref<4x128xf32, #tpu.memory_space<vmem>>, vector<4x128xf32>
    tpu.vector_store %arg5[%c0_12, %c0_13], %17 {strides = array<i32>} : memref<4x128xf32, #tpu.memory_space<vmem>>, vector<4x128xf32>,
    return
  }
  func.func @transform_0(%arg0: i32) -> (i32, i32) {
    %c0_i32 = arith.constant 0 : i32
    %c0_i32_0 = arith.constant 0 : i32
    return %c0_i32, %arg0 : i32, i32
  }
  func.func @transform_1(%arg0: i32) -> (i32, i32) {
    %c0_i32 = arith.constant 0 : i32
    %c0_i32_0 = arith.constant 0 : i32
    %c0_i32_1 = arith.constant 0 : i32
    return %c0_i32, %c0_i32_0 : i32, i32
  }
  func.func @transform_2(%arg0: i32) -> (i32, i32) {
    %c0_i32 = arith.constant 0 : i32
    %c0_i32_0 = arith.constant 0 : i32
    %c0_i32_1 = arith.constant 0 : i32
    return %c0_i32, %c0_i32_0 : i32, i32
  }
  func.func @transform_3(%arg0: i32) -> (i32, i32) {
    %c0_i32 = arith.constant 0 : i32
    %c0_i32_0 = arith.constant 0 : i32
    %c0_i32_1 = arith.constant 0 : i32
    return %c0_i32, %c0_i32_0 : i32, i32
  }
  func.func @transform_4(%arg0: i32) -> (i32, i32) {
    %c0_i32 = arith.constant 0 : i32
    %c0_i32_0 = arith.constant 0 : i32
    return %c0_i32, %arg0 : i32, i32
  }
}

</mosaic_0001>

<llo_original>
// kernel: tpu_custom_call.1
$region0: #{tpu_custom_call.1}
  #allocation0 [shape = 'u32[]', space=smem, size = 0x4, offset = 0x4, fixed_abs, tag = 'smem constant byte address 0x4 - core index']
  #allocation1 [shape = 'u32[72,128]{1,0:T(1,128)}', space=vmem, size = 0x9000, scoped, tag = 'internal scratch']
  %s0 = inlined_call_operand.hbm [shape: f32[32,256], index: 0, kind: input, shape index: {}]
  %s1 = inlined_call_operand.vmem [shape: f32[32,32], index: 1, kind: input, shape index: {}]
  %s2 = inlined_call_operand.vmem [shape: f32[4,32], index: 2, kind: input, shape index: {}]
  %s3 = inlined_call_operand.vmem [shape: f32[40,1], index: 3, kind: input, shape index: {}]
  %s4 = inlined_call_operand.hbm [shape: f32[4,256], index: 4, kind: output, shape index: {}]
  %s5 = sld [smem:[#allocation0]]
  $region53: #{tpu_custom_call.1} parent=0
    _
  %s7 = ssub.s32 1, %s5
  %s8 = scalar_select 0, %s7, %s5
  $region1: #{tpu_custom_call.1} parent=0
    #allocation2 [shape = 'u8[32768]{0}', space=vmem, size = 0x8000, scoped, tag = 'input window, operand 0']
    #allocation3 [shape = 's32[2]{0}', space=sflag, size = 0x8, scoped, tag = 'scoped memory for tpu_custom_call.1']
    #allocation4 [shape = 's32[2]{0}', space=sflag, size = 0x8, scoped, tag = 'scoped memory for tpu_custom_call.1']
    #allocation5 [shape = 'u8[4096]{0}', space=vmem, size = 0x1000, scoped, tag = 'output window, operand 0']
    %9 = vsyncpa [#allocation3], 0
    %s10 = scalar_lea.sflag [#allocation3], 1
    %11 = vsyncpa %s10, 0
    %12 = vsyncpa [#allocation4], 0
    %s13 = scalar_lea.sflag [#allocation4], 1
    %14 = vsyncpa %s13, 0
    loop: start=0, step=1, limit=4
    $region2: #{tpu_custom_call.1} parent=1 // loop_pre_header
      _
    $region3: #{tpu_custom_call.1} parent=1 // loop_header
      %s16 = sphi 0, %s20
      %p17 = scmp.ge.s32.totalorder %s16, 4
      %s26 = sphi 0, %s28
      %s29 = sphi 0, %s26
      %s30 = sphi 0, %s29
      %s46 = sphi 0, %s30
      %s50 = sphi 0, %s50
      %s52 = sphi 0, %s50
      %s53 = sphi 0, %s52
      %s67 = sphi 0, %s53
      %s71 = sphi 0, %s71
      %s73 = sphi 0, %s71
      %s74 = sphi 0, %s73
      %s88 = sphi 0, %s74
      %s92 = sphi 0, %s92
      %s94 = sphi 0, %s92
      %s95 = sphi 0, %s94
      %s109 = sphi 0, %s95
      %s115 = sphi 0, %s117
      %s118 = sphi 0, %s115
      %s119 = sphi 0, %s118
      %s135 = sphi 0, %s119
    $region4: #{tpu_custom_call.1} parent=1 // loop_header_branch
      %19 = sbr.rel (%p17) target = $region8
    $region5: #{tpu_custom_call.1} parent=1 // loop_body
      %s21 = ssub.s32 %s16, 1
      %s22 = ssub.s32 %s16, 2
      %s23 = sadd.s32 %s16, 1
      %s24 = ssub.s32 %s16, %s23
      %p25 = scmp.eq.s32.totalorder %s24, 0
      %s27 = sadd.s32 %s26, 1
      %s28 = scalar_select %p25, %s26, %s27
      %p31 = pneg %p25
      %p32 = scmp.eq.s32.totalorder %s16, 1
      %p33 = por %p31, %p32
      %p34 = scmp.ne.s32.totalorder %s26, %s29
      %p35 = scmp.eq.s32.totalorder %s16, 0
      %p36 = por %p34, %p35
      %p37 = scmp.ne.s32.totalorder %s26, %s29
      %p38 = scmp.eq.s32.totalorder %s21, 1
      %p39 = por %p37, %p38
      %p40 = scmp.ne.s32.totalorder %s29, %s30
      %p41 = scmp.eq.s32.totalorder %s21, 0
      %p42 = por %p40, %p41
      %p43 = scmp.ne.s32.totalorder %s29, %s30
      %p44 = scmp.eq.s32.totalorder %s22, 1
      %p45 = por %p43, %p44
      %p47 = scmp.ne.s32.totalorder %s30, %s46
      %p48 = scmp.eq.s32.totalorder %s22, 0
      %p49 = por %p47, %p48
      %s51 = sadd.s32 %s50, 1
      %p54 = scmp.eq.s32.totalorder %s16, 1
      %p55 = scmp.ne.s32.totalorder %s50, %s52
      %p56 = scmp.eq.s32.totalorder %s16, 0
      %p57 = por %p55, %p56
      %p58 = scmp.ne.s32.totalorder %s50, %s52
      %p59 = scmp.eq.s32.totalorder %s21, 1
      %p60 = por %p58, %p59
      %p61 = scmp.ne.s32.totalorder %s52, %s53
      %p62 = scmp.eq.s32.totalorder %s21, 0
      %p63 = por %p61, %p62
      %p64 = scmp.ne.s32.totalorder %s52, %s53
      %p65 = scmp.eq.s32.totalorder %s22, 1
      %p66 = por %p64, %p65
      %p68 = scmp.ne.s32.totalorder %s53, %s67
      %p69 = scmp.eq.s32.totalorder %s22, 0
      %p70 = por %p68, %p69
      %s72 = sadd.s32 %s71, 1
      %p75 = scmp.eq.s32.totalorder %s16, 1
      %p76 = scmp.ne.s32.totalorder %s71, %s73
      %p77 = scmp.eq.s32.totalorder %s16, 0
      %p78 = por %p76, %p77
      %p79 = scmp.ne.s32.totalorder %s71, %s73
      %p80 = scmp.eq.s32.totalorder %s21, 1
      %p81 = por %p79, %p80
      %p82 = scmp.ne.s32.totalorder %s73, %s74
      %p83 = scmp.eq.s32.totalorder %s21, 0
      %p84 = por %p82, %p83
      %p85 = scmp.ne.s32.totalorder %s73, %s74
      %p86 = scmp.eq.s32.totalorder %s22, 1
      %p87 = por %p85, %p86
      %p89 = scmp.ne.s32.totalorder %s74, %s88
      %p90 = scmp.eq.s32.totalorder %s22, 0
      %p91 = por %p89, %p90
      %s93 = sadd.s32 %s92, 1
      %p96 = scmp.eq.s32.totalorder %s16, 1
      %p97 = scmp.ne.s32.totalorder %s92, %s94
      %p98 = scmp.eq.s32.totalorder %s16, 0
      %p99 = por %p97, %p98
      %p100 = scmp.ne.s32.totalorder %s92, %s94
      %p101 = scmp.eq.s32.totalorder %s21, 1
      %p102 = por %p100, %p101
      %p103 = scmp.ne.s32.totalorder %s94, %s95
      %p104 = scmp.eq.s32.totalorder %s21, 0
      %p105 = por %p103, %p104
      %p106 = scmp.ne.s32.totalorder %s94, %s95
      %p107 = scmp.eq.s32.totalorder %s22, 1
      %p108 = por %p106, %p107
      %p110 = scmp.ne.s32.totalorder %s95, %s109
      %p111 = scmp.eq.s32.totalorder %s22, 0
      %p112 = por %p110, %p111
      %s113 = ssub.s32 %s16, %s23
      %p114 = scmp.eq.s32.totalorder %s113, 0
      %s116 = sadd.s32 %s115, 1
      %s117 = scalar_select %p114, %s115, %s116
      %p120 = pneg %p114
      %p121 = scmp.eq.s32.totalorder %s16, 1
      %p122 = por %p120, %p121
      %p123 = scmp.ne.s32.totalorder %s115, %s118
      %p124 = scmp.eq.s32.totalorder %s16, 0
      %p125 = por %p123, %p124
      %p126 = scmp.ne.s32.totalorder %s115, %s118
      %p127 = scmp.eq.s32.totalorder %s21, 1
      %p128 = por %p126, %p127
      %p129 = scmp.ne.s32.totalorder %s118, %s119
      %p130 = scmp.eq.s32.totalorder %s21, 0
      %p131 = por %p129, %p130
      %p132 = scmp.ne.s32.totalorder %s118, %s119
      %p133 = scmp.eq.s32.totalorder %s22, 1
      %p134 = por %p132, %p133
      %p136 = scmp.ne.s32.totalorder %s119, %s135
      %p137 = scmp.eq.s32.totalorder %s22, 0
      %p138 = por %p136, %p137
      %p139 = scmp.le.s32.totalorder 1, %s16
      %p140 = scmp.lt.s32.totalorder %s16, 3
      %p141 = pnand %p139, %p140
      %p142 = pneg %p141
      // Predicated region
      $region9: #{tpu_custom_call.1} parent=5 // pred_check
        _
      $region10: #{tpu_custom_call.1} parent=5 // pred_check_branch
        %144 = sbr.rel (%p141) target = $region12
      $region11: #{tpu_custom_call.1} parent=5 // pred_region
        %s145 = ssub.s32 %s16, 1
        // Predicated region
        $region13: #{tpu_custom_call.1} parent=11 // pred_check
          %p146 = pneg %p63
        $region14: #{tpu_custom_call.1} parent=11 // pred_check_branch
          %148 = sbr.rel (%p146) target = $region16
        $region15: #{tpu_custom_call.1} parent=11 // pred_region
          _
        $region16: #{tpu_custom_call.1} parent=11 // pred_fallthru
          _
        // Predicated region
        $region17: #{tpu_custom_call.1} parent=11 // pred_check
          %p149 = pneg %p84
        $region18: #{tpu_custom_call.1} parent=11 // pred_check_branch
          %151 = sbr.rel (%p149) target = $region20
        $region19: #{tpu_custom_call.1} parent=11 // pred_region
          _
        $region20: #{tpu_custom_call.1} parent=11 // pred_fallthru
          _
        // Predicated region
        $region21: #{tpu_custom_call.1} parent=11 // pred_check
          %p152 = pneg %p105
        $region22: #{tpu_custom_call.1} parent=11 // pred_check_branch
          %154 = sbr.rel (%p152) target = $region24
        $region23: #{tpu_custom_call.1} parent=11 // pred_region
          _
        $region24: #{tpu_custom_call.1} parent=11 // pred_fallthru
          _
      $region12: #{tpu_custom_call.1} parent=5 // pred_fallthru
        _
      %p155 = scmp.lt.s32.totalorder %s16, 2
      // Predicated region
      $region25: #{tpu_custom_call.1} parent=5 // pred_check
        %p156 = pneg %p155
      $region26: #{tpu_custom_call.1} parent=5 // pred_check_branch
        %158 = sbr.rel (%p156) target = $region28
      $region27: #{tpu_custom_call.1} parent=5 // pred_region
        // Predicated region
        $region29: #{tpu_custom_call.1} parent=27 // pred_check
          %p159 = pneg %p36
        $region30: #{tpu_custom_call.1} parent=27 // pred_check_branch
          %161 = sbr.rel (%p159) target = $region32
        $region31: #{tpu_custom_call.1} parent=27 // pred_region
          %s162 = sand.u32 %s26, 1
          %s163 = scalar_lea.sflag [#allocation3], %s162
          %s164 = sand.u32 %s26, 1
          %s165 = smul.addr %s164, 32
          %s166 = scalar_lea.vmem [#allocation2], %s165
          %168 = vsyncadd %s163, 0
          %s169 = smul.addr %s16, 8
          %s170 = scalar_lea.hbm %s0, %s169
          %s171 = sshll.u32 %s170, 4
          %s172 = int_to_ptr.hbm [resolvable:$true] %s171
          %s173 = sshll.u32 %s166, 4
          %s174 = int_to_ptr.vmem [resolvable:$true] %s173
          %179 = dma.hbm_to_vmem [thread:$0]  %s172, 512, %s174, %s163, 256, 128, 8
        $region32: #{tpu_custom_call.1} parent=27 // pred_fallthru
          _
      $region28: #{tpu_custom_call.1} parent=5 // pred_fallthru
        _
      %p180 = scmp.le.s32.totalorder 1, %s16
      %p181 = scmp.lt.s32.totalorder %s16, 3
      %p182 = pnand %p180, %p181
      %p183 = pneg %p182
      // Predicated region
      $region33: #{tpu_custom_call.1} parent=5 // pred_check
        _
      $region34: #{tpu_custom_call.1} parent=5 // pred_check_branch
        %185 = sbr.rel (%p182) target = $region36
      $region35: #{tpu_custom_call.1} parent=5 // pred_region
        %s186 = ssub.s32 %s16, 1
        %s187 = sand.u32 %s29, 1
        %s188 = scalar_lea.sflag [#allocation3], %s187
        %s189 = sand.u32 %s29, 1
        %s190 = smul.addr %s189, 32
        %s191 = scalar_lea.vmem [#allocation2], %s190
        // Predicated region
        $region37: #{tpu_custom_call.1} parent=35 // pred_check
          %p192 = pneg %p42
        $region38: #{tpu_custom_call.1} parent=35 // pred_check_branch
          %194 = sbr.rel (%p192) target = $region40
        $region39: #{tpu_custom_call.1} parent=35 // pred_region
          %196 = dma.done %s188, 512
        $region40: #{tpu_custom_call.1} parent=35 // pred_fallthru
          _
        %s197 = sand.u32 %s29, 1
        %s198 = scalar_lea.sflag [#allocation3], %s197
        %s199 = sand.u32 %s29, 1
        %s200 = smul.addr %s199, 32
        %s201 = scalar_lea.vmem [#allocation2], %s200
        %p202 = pneg %p42
        %p203 = pneg %p39
        %p204 = pneg %p63
        %p205 = pneg %p60
        %p206 = pneg %p84
        %p207 = pneg %p81
        %p208 = pneg %p105
        %p209 = pneg %p102
        %p210 = pneg %p131
        %p211 = pneg %p128
        %s212 = sand.u32 %s118, 1
        %s213 = scalar_lea.sflag [#allocation4], %s212
        %s214 = sand.u32 %s118, 1
        %s215 = smul.addr %s214, 4
        %s216 = scalar_lea.vmem [#allocation5], %s215
        %v217 = vld [vmem:[%s1] sm:$0xff]
        %v218 = vld [vmem:[%s1 + $0x8] sm:$0xff]
        %v219 = vld [vmem:[%s1 + $0x10] sm:$0xff]
        %v220 = vld [vmem:[%s1 + $0x18] sm:$0xff]
        %v221 = vld [vmem:[%s191] sm:$0xff]
        %v222 = vld [vmem:[%s191 + $0x8] sm:$0xff]
        %v223 = vld [vmem:[%s191 + $0x10] sm:$0xff]
        %v224 = vld [vmem:[%s191 + $0x18] sm:$0xff]
        %v225 = vld [vmem:[%s3] sm:$0xff]
        %v226 = vld [vmem:[%s3 + $0x8] sm:$0xff]
        %v227 = vld [vmem:[%s3 + $0x10] sm:$0xff]
        %v228 = vld [vmem:[%s3 + $0x18] sm:$0xff]
        %230 = vset.pattern.permute.xlu0 0
        %231 = vperm.xlu0 %230, %v225
        %v232 = vpop.permute.xlu0 %231
        %235 = vset.pattern.permute.xlu0 0
        %236 = vperm.xlu0 %235, %v226
        %v237 = vpop.permute.xlu0 %236
        %240 = vset.pattern.permute.xlu0 0
        %241 = vperm.xlu0 %240, %v227
        %v242 = vpop.permute.xlu0 %241
        %245 = vset.pattern.permute.xlu0 0
        %246 = vperm.xlu0 %245, %v228
        %v247 = vpop.permute.xlu0 %246
        %vm249 = vcmask 261120
        %v251 = vsel %vm249, %v217, 0
        %v254 = vsel %vm249, %v218, 0
        %v257 = vsel %vm249, %v219, 0
        %v260 = vsel %vm249, %v220, 0
        %262 = vmatpush.msra.mxu0 0.0
        %263 = vmatpush.msra.mxu0 0.0
        %264 = vmatpush.msra.mxu0 0.0
        %265 = vmatpush.msra.mxu0 0.0
        %266 = vmatpush.msra.mxu0 0.0
        %267 = vmatpush.msra.mxu0 0.0
        %268 = vmatpush.msra.mxu0 0.0
        %269 = vmatpush.msra.mxu0 0.0
        %270 = vmatpush.msra.mxu0 0.0
        %271 = vmatpush.msra.mxu0 0.0
        %272 = vmatpush.msra.mxu0 0.0
        %273 = vmatpush.msra.mxu0 0.0
        %274 = vmatpush.msra.mxu0 %v224
        %275 = vmatpush.msra.mxu0 %v223
        %276 = vmatpush.msra.mxu0 %v222
        %277 = vmatpush.msra.mxu0 %v221
        %278 = vmatmul.f32.gmra.mxu0 %v251
        %v279 = vpop.f32.mrf.mxu0
        %v280 = vadd.f32 %v232, %v279
        %281 = vmatmul.f32.gmra.mxu0 %v254
        %v282 = vpop.f32.mrf.mxu0
        %v283 = vadd.f32 %v237, %v282
        %284 = vmatmul.f32.gmra.mxu0 %v257
        %v285 = vpop.f32.mrf.mxu0
        %v286 = vadd.f32 %v242, %v285
        %287 = vmatmul.f32.gmra.mxu0 %v260
        %v288 = vpop.f32.mrf.mxu0
        %v289 = vadd.f32 %v247, %v288
        %290 = vdwg.mxu0
        %v291 = vsub.f32 0.0, %v280
        %v292 = vsub.f32 0.0, %v283
        %v293 = vsub.f32 0.0, %v286
        %v294 = vsub.f32 0.0, %v289
        %v295 = vmul.f32 %v291, 1.442695
        %v296 = vpow.pop %v295
        %v297 = vmul.f32 %v292, 1.442695
        %v298 = vpow.pop %v297
        %v299 = vmul.f32 %v293, 1.442695
        %v300 = vpow.pop %v299
        %v301 = vmul.f32 %v294, 1.442695
        %v302 = vpow.pop %v301
        %v303 = vadd.f32 %v296, 1.0
        %v304 = vadd.f32 %v298, 1.0
        %v305 = vadd.f32 %v300, 1.0
        %v306 = vadd.f32 %v302, 1.0
        %v307 = vrcp.pop %v303
        %v308 = vmul.f32 %v303, %v307
        %v309 = vsub.f32 1.0, %v308
        %v310 = vmul.f32 %v307, %v309
        %v311 = vadd.f32 %v307, %v310
        %vm312 = vweird.f32 %v303
        %vm313 = vweird.f32 %v307
        %vm314 = vmor %vm312, %vm313
        %v315 = vsel %vm314, %v307, %v311
        %v316 = vand.u32 2147483647, %v303
        %vm317 = vcmp.eq.f32.partialorder %v316, 8.507059e+37
        %v318 = vand.u32 %v303, 2147483648
        %v319 = vor.u32 1.1754944e-38, %v318
        %v320 = vsel %vm317, %v319, %v315
        %v321 = vmul.f32 1.0, %v320
        %v322 = vrcp.pop %v304
        %v323 = vmul.f32 %v304, %v322
        %v324 = vsub.f32 1.0, %v323
        %v325 = vmul.f32 %v322, %v324
        %v326 = vadd.f32 %v322, %v325
        %vm327 = vweird.f32 %v304
        %vm328 = vweird.f32 %v322
        %vm329 = vmor %vm327, %vm328
        %v330 = vsel %vm329, %v322, %v326
        %v331 = vand.u32 2147483647, %v304
        %vm332 = vcmp.eq.f32.partialorder %v331, 8.507059e+37
        %v333 = vand.u32 %v304, 2147483648
        %v334 = vor.u32 1.1754944e-38, %v333
        %v335 = vsel %vm332, %v334, %v330
        %v336 = vmul.f32 1.0, %v335
        %v337 = vrcp.pop %v305
        %v338 = vmul.f32 %v305, %v337
        %v339 = vsub.f32 1.0, %v338
        %v340 = vmul.f32 %v337, %v339
        %v341 = vadd.f32 %v337, %v340
        %vm342 = vweird.f32 %v305
        %vm343 = vweird.f32 %v337
        %vm344 = vmor %vm342, %vm343
        %v345 = vsel %vm344, %v337, %v341
        %v346 = vand.u32 2147483647, %v305
        %vm347 = vcmp.eq.f32.partialorder %v346, 8.507059e+37
        %v348 = vand.u32 %v305, 2147483648
        %v349 = vor.u32 1.1754944e-38, %v348
        %v350 = vsel %vm347, %v349, %v345
        %v351 = vmul.f32 1.0, %v350
        %v352 = vrcp.pop %v306
        %v353 = vmul.f32 %v306, %v352
        %v354 = vsub.f32 1.0, %v353
        %v355 = vmul.f32 %v352, %v354
        %v356 = vadd.f32 %v352, %v355
        %vm357 = vweird.f32 %v306
        %vm358 = vweird.f32 %v352
        %vm359 = vmor %vm357, %vm358
        %v360 = vsel %vm359, %v352, %v356
        %v361 = vand.u32 2147483647, %v306
        %vm362 = vcmp.eq.f32.partialorder %v361, 8.507059e+37
        %v363 = vand.u32 %v306, 2147483648
        %v364 = vor.u32 1.1754944e-38, %v363
        %v365 = vsel %vm362, %v364, %v360
        %v366 = vmul.f32 1.0, %v365
        %v367 = vld [vmem:[%s2] sm:$0xf]
        %v368 = vld [vmem:[%s3 + $0x20] sm:$0xf]
        %370 = vset.pattern.permute.xlu0 0
        %371 = vperm.xlu0 %370, %v368
        %v372 = vpop.permute.xlu0 %371
        %v375 = vsel %vm249, %v367, 0
        %377 = vmatpush.msra.mxu0 0.0
        %378 = vmatpush.msra.mxu0 0.0
        %379 = vmatpush.msra.mxu0 0.0
        %380 = vmatpush.msra.mxu0 0.0
        %381 = vmatpush.msra.mxu0 0.0
        %382 = vmatpush.msra.mxu0 0.0
        %383 = vmatpush.msra.mxu0 0.0
        %384 = vmatpush.msra.mxu0 0.0
        %385 = vmatpush.msra.mxu0 0.0
        %386 = vmatpush.msra.mxu0 0.0
        %387 = vmatpush.msra.mxu0 0.0
        %388 = vmatpush.msra.mxu0 0.0
        %389 = vmatpush.msra.mxu0 %v366
        %390 = vmatpush.msra.mxu0 %v351
        %391 = vmatpush.msra.mxu0 %v336
        %392 = vmatpush.msra.mxu0 %v321
        %393 = vmatmul.f32.gmra.mxu0 %v375
        %v394 = vpop.f32.mrf.mxu0
        %v395 = vadd.f32 %v372, %v394
        %396 = vdwg.mxu0
        %397 = vst [vmem:[%s216] sm:$0xf] %v395
        %s398 = sand.u32 %s118, 1
        %s399 = scalar_lea.sflag [#allocation4], %s398
        %s400 = sand.u32 %s118, 1
        %s401 = smul.addr %s400, 4
        %s402 = scalar_lea.vmem [#allocation5], %s401
        // Predicated region
        $region41: #{tpu_custom_call.1} parent=35 // pred_check
          %p403 = pneg %p128
        $region42: #{tpu_custom_call.1} parent=35 // pred_check_branch
          %405 = sbr.rel (%p403) target = $region44
        $region43: #{tpu_custom_call.1} parent=35 // pred_region
          %407 = vsyncadd %s399, 0
          %s408 = smul.addr %s21, 4
          %s409 = scalar_lea.hbm %s4, %s408
          %s411 = sshll.u32 %s402, 4
          %s412 = int_to_ptr.vmem [resolvable:$true] %s411
          %s413 = sshll.u32 %s409, 4
          %s414 = int_to_ptr.hbm [resolvable:$true] %s413
          %416 = dma.vmem_to_hbm [thread:$0]  %s412, 64, %s414, %s399
        $region44: #{tpu_custom_call.1} parent=35 // pred_fallthru
          _
      $region36: #{tpu_custom_call.1} parent=5 // pred_fallthru
        _
      %p417 = scmp.le.s32.totalorder 2, %s16
      // Predicated region
      $region45: #{tpu_custom_call.1} parent=5 // pred_check
        %p418 = pneg %p417
      $region46: #{tpu_custom_call.1} parent=5 // pred_check_branch
        %420 = sbr.rel (%p418) target = $region48
      $region47: #{tpu_custom_call.1} parent=5 // pred_region
        %s421 = ssub.s32 %s16, 2
        // Predicated region
        $region49: #{tpu_custom_call.1} parent=47 // pred_check
          %p422 = pneg %p134
        $region50: #{tpu_custom_call.1} parent=47 // pred_check_branch
          %424 = sbr.rel (%p422) target = $region52
        $region51: #{tpu_custom_call.1} parent=47 // pred_region
          %s425 = sand.u32 %s119, 1
          %s426 = scalar_lea.sflag [#allocation4], %s425
          %s427 = sand.u32 %s119, 1
          %s428 = smul.addr %s427, 4
          %s429 = scalar_lea.vmem [#allocation5], %s428
          %431 = dma.done %s426, 64
        $region52: #{tpu_custom_call.1} parent=47 // pred_fallthru
          _
      $region48: #{tpu_custom_call.1} parent=5 // pred_fallthru
        _
    $region6: #{tpu_custom_call.1} parent=1 // loop_footer
      %s20 = sadd.s32 1, %s16
    $region7: #{tpu_custom_call.1} parent=1 // loop_footer_branch
      %15 = sbr.rel target = $region3
    $region8: #{tpu_custom_call.1} parent=1 // loop_exit
      _
    %432 = vsyncpa [#allocation3], 1
    %s433 = scalar_lea.sflag [#allocation3], 1
    %434 = vsyncpa %s433, 1
    %435 = vsyncpa [#allocation4], 1
    %s436 = scalar_lea.sflag [#allocation4], 1
    %437 = vsyncpa %s436, 1

</llo_original>
